<compile_context>
chip_gen: v7x
topology: tpu7x:2x2x1
jax: 0.10.0
libtpu: 0.0.40
codegen_flags: <defaults>
</compile_context>

<pallas_src>
import jax
import jax.numpy as jnp
from jax.experimental import pallas as pl
from jax.experimental.pallas import tpu as pltpu


# ----------------------------- kernels ---------------------------------------
def _bmm_bias_kernel(w_ref, x_ref, b_ref, o_ref):
    # w:(D,TM,TK)  x:(D,TK,TN)  b:(D,TM,1)  o:(D,TM,TN); single K block.
    y = jnp.einsum("dmk,dkn->dmn", w_ref[...], x_ref[...],
                   preferred_element_type=jnp.float32)
    o_ref[...] = (y + b_ref[...].astype(jnp.float32)).astype(o_ref.dtype)


def _bmm_kernel(w_ref, x_ref, o_ref):
    y = jnp.einsum("dmk,dkn->dmn", w_ref[...], x_ref[...],
                   preferred_element_type=jnp.float32)
    o_ref[...] = y.astype(o_ref.dtype)


def _bmm_acc_bias_kernel(w_ref, x_ref, b_ref, o_ref, acc_ref):
    # K (contraction) axis is tiled: accumulate in f32 scratch, finalize at end.
    k = pl.program_id(3)

    @pl.when(k == 0)
    def _():
        acc_ref[...] = jnp.zeros_like(acc_ref)

    acc_ref[...] += jnp.einsum("dmk,dkn->dmn", w_ref[...], x_ref[...],
                               preferred_element_type=jnp.float32)

    @pl.when(k == pl.num_programs(3) - 1)
    def _():
        o_ref[...] = (acc_ref[...] + b_ref[...].astype(jnp.float32)).astype(o_ref.dtype)


def _bmm_acc_kernel(w_ref, x_ref, o_ref, acc_ref):
    k = pl.program_id(3)

    @pl.when(k == 0)
    def _():
        acc_ref[...] = jnp.zeros_like(acc_ref)

    acc_ref[...] += jnp.einsum("dmk,dkn->dmn", w_ref[...], x_ref[...],
                               preferred_element_type=jnp.float32)

    @pl.when(k == pl.num_programs(3) - 1)
    def _():
        o_ref[...] = acc_ref[...].astype(o_ref.dtype)


def _bcast_bias_kernel(w_ref, x_ref, b_ref, o_ref):
    # in_features == 1 path: (D,TM,1) * (D,1,TN) + (D,TM,1)  -> (D,TM,TN)
    y = w_ref[...].astype(jnp.float32) * x_ref[...].astype(jnp.float32)
    o_ref[...] = (y + b_ref[...].astype(jnp.float32)).astype(o_ref.dtype)


def _bcast_kernel(w_ref, x_ref, o_ref):
    y = w_ref[...].astype(jnp.float32) * x_ref[...].astype(jnp.float32)
    o_ref[...] = y.astype(o_ref.dtype)


# ----------------------------- helpers ----------------------------------------
def _cdiv(a, b):
    return -(-a // b)


def _pick_tile(size, tile):
    # Tile only when the axis is large enough that tiling pays off; otherwise
    # the full extent is used as the block dim (Pallas allows full-dim blocks).
    return tile if size > 2 * tile else size


def _pad_to(a, axis, multiple):
    size = a.shape[axis]
    rem = (-size) % multiple
    if rem == 0:
        return a
    pads = [(0, 0)] * a.ndim
    pads[axis] = (0, rem)
    return jnp.pad(a, pads)


# ----------------------------- wrapper ----------------------------------------
def tnn_linear(x, weight, bias=None, *, use_pallas=None):
    """y = W @ x (+ b), batched over the leading 'dim' axis.

    x:      [dim, n1, N]
    weight: [dim, n2, n1]
    bias:   [dim, n2, 1] or None
    returns [dim, n2, N]   (dtype follows x.dtype; compute accumulates in f32)
    """
    dim, n1, N = x.shape
    dim_w, n2, n1_w = weight.shape
    assert dim == dim_w and n1 == n1_w, "shape mismatch between x and weight"
    if bias is not None:
        assert bias.shape == (dim, n2, 1), "bad bias shape"

    out_dtype = x.dtype
    flops = 2 * dim * n2 * n1 * N

    # For trivially small problems, plain XLA fusion beats the pallas_call
    # launch + per-step overhead.
    if use_pallas is None:
        use_pallas = flops >= (1 << 20)
    if not use_pallas:
        y = jnp.einsum("doi,din->don", weight, x,
                       preferred_element_type=jnp.float32)
        if bias is not None:
            y = y + bias.astype(jnp.float32)
        return y.astype(out_dtype)

    has_bias = bias is not None
    elementwise = (n1 == 1)

    # ---- per-d inner tiling (only when the per-d axes are large) ----
    TM = _pick_tile(n2, 512)                     # sublane axis of W / out
    TN = _pick_tile(N, 512)                      # lane axis of x / out (>=128 when tiled)
    TK = 1 if elementwise else _pick_tile(n1, 512)  # contraction axis
    acc_needed = (not elementwise) and (TK != n1)

    w_bytes = weight.dtype.itemsize
    in_bytes = x.dtype.itemsize
    out_bytes = jnp.dtype(out_dtype).itemsize

    # ---- choose D_BLK from a conservative VMEM budget (sized for v7x) ----
    per_d = 2 * (TM * TK * w_bytes          # W block, double-buffered
                 + TK * TN * in_bytes       # x block
                 + (TM * w_bytes if has_bias else 0)
                 + TM * TN * out_bytes)     # output block
    if acc_needed:
        per_d += TM * TN * 4                # f32 accumulator (single-buffered)

    budget = 28 * 1024 * 1024               # keeps total << 48 MiB scoped VMEM
    d_cap = max(1, min(dim, budget // max(per_d, 1)))
    d_blocks = _cdiv(dim, d_cap)
    if dim >= 2:
        d_blocks = max(d_blocks, 2)          # >=2 grid steps so v7x megacore can split
    D_BLK = _cdiv(dim, d_blocks)
    d_blocks = _cdiv(dim, D_BLK)             # re-balance -> padding waste < d_blocks

    # ---- zero-pad to block multiples (zeros along n1 keep the contraction exact) ----
    wp = _pad_to(_pad_to(_pad_to(weight, 0, D_BLK), 1, TM), 2, TK)
    xp = _pad_to(_pad_to(_pad_to(x, 0, D_BLK), 1, TK), 2, TN)
    bp = _pad_to(_pad_to(bias, 0, D_BLK), 1, TM) if has_bias else None

    dim_p, n1_p, N_p = xp.shape
    n2_p = wp.shape[1]
    grid = (dim_p // D_BLK, n2_p // TM, N_p // TN, n1_p // TK)
    k_blocks = grid[3]

    # ---- block specs (contraction axis is the last, "arbitrary" grid axis) ----
    w_spec = pl.BlockSpec((D_BLK, TM, TK), lambda d, m, n, k: (d, m, k))
    x_spec = pl.BlockSpec((D_BLK, TK, TN), lambda d, m, n, k: (d, k, n))
    b_spec = pl.BlockSpec((D_BLK, TM, 1), lambda d, m, n, k: (d, m, 0))
    o_spec = pl.BlockSpec((D_BLK, TM, TN), lambda d, m, n, k: (d, m, n))

    scratch_shapes = ()
    if elementwise:
        kernel = _bcast_bias_kernel if has_bias else _bcast_kernel
    elif k_blocks == 1:
        kernel = _bmm_bias_kernel if has_bias else _bmm_kernel
    else:
        kernel = _bmm_acc_bias_kernel if has_bias else _bmm_acc_kernel
        scratch_shapes = (pltpu.VMEM((D_BLK, TM, TN), jnp.float32),)

    in_specs = [w_spec, x_spec] + ([b_spec] if has_bias else [])
    args = (wp, xp) + ((bp,) if has_bias else ())

    bytes_accessed = (x.size * in_bytes + weight.size * w_bytes
                      + (bias.size * bias.dtype.itemsize if has_bias else 0)
                      + dim * n2 * N * out_bytes)
    cost = pl.CostEstimate(flops=flops, transcendentals=0,
                           bytes_accessed=bytes_accessed)

    y_p = pl.pallas_call(
        kernel,
        out_shape=jax.ShapeDtypeStruct((dim_p, n2_p, N_p), out_dtype),
        grid_spec=pltpu.PrefetchScalarGridSpec(
            num_scalar_prefetch=0,
            grid=grid,
            in_specs=in_specs,
            out_specs=o_spec,
            scratch_shapes=scratch_shapes,
        ),
        compiler_params=pltpu.CompilerParams(
            dimension_semantics=("parallel", "parallel", "parallel", "arbitrary"),
            vmem_limit_bytes=48 * 1024 * 1024,
        ),
        cost_estimate=cost,
    )(*args)

    if (dim_p, n2_p, N_p) != (dim, n2, N):
        y_p = y_p[:dim, :n2, :N]
    return y_p


# ----------------------------- self-test --------------------------------------
if __name__ == "__main__":
    dim, n2, n1, N = 4, 16, 32, 8
    key = jax.random.PRNGKey(0)
    kx, kw, kb = jax.random.split(key, 3)

    x = jax.random.normal(kx, (dim, n1, N), dtype=jnp.float32)
    weight = jax.random.normal(kw, (dim, n2, n1), dtype=jnp.float32)
    bias = jax.random.normal(kb, (dim, n2, 1), dtype=jnp.float32)

    # main path: batched matmul + bias
    y = tnn_linear(x, weight, bias, use_pallas=True)
    jax.block_until_ready(y)
    y_ref = jnp.einsum("doi,din->don", weight, x) + bias
    assert y.shape == (dim, n2, N)
    assert jnp.allclose(y, y_ref, atol=1e-5, rtol=1e-5)

    # no-bias path
    y_nb = tnn_linear(x, weight, None, use_pallas=True)
    jax.block_until_ready(y_nb)
    assert jnp.allclose(y_nb, jnp.einsum("doi,din->don", weight, x),
                        atol=1e-5, rtol=1e-5)

    # in_features == 1 (elementwise broadcast) path
    x1 = jax.random.normal(kx, (dim, 1, N), dtype=jnp.float32)
    w1 = jax.random.normal(kw, (dim, n2, 1), dtype=jnp.float32)
    b1 = jax.random.normal(kb, (dim, n2, 1), dtype=jnp.float32)
    y1 = tnn_linear(x1, w1, b1, use_pallas=True)
    jax.block_until_ready(y1)
    assert jnp.allclose(y1, w1 * x1 + b1, atol=1e-5, rtol=1e-5)

    # non-divisible 'dim' exercises the zero-pad + slice path
    dim2 = 5
    x2 = jax.random.normal(kx, (dim2, n1, N), dtype=jnp.float32)
    w2 = jax.random.normal(kw, (dim2, n2, n1), dtype=jnp.float32)
    b2 = jax.random.normal(kb, (dim2, n2, 1), dtype=jnp.float32)
    y2 = tnn_linear(x2, w2, b2, use_pallas=True)
    jax.block_until_ready(y2)
    assert jnp.allclose(y2, jnp.einsum("doi,din->don", w2, x2) + b2,
                        atol=1e-5, rtol=1e-5)

    print("KERNEL_OK")
</pallas_src>

<mosaic_0001>
module attributes {stable_mosaic.version = 11 : i64} {
  func.func @_bmm_bias_kernel(%arg0: i32, %arg1: i32, %arg2: i32, %arg3: i32, %arg4: memref<2x16x32xf32, #tpu.memory_space<vmem>>, %arg5: memref<2x32x8xf32, #tpu.memory_space<vmem>>, %arg6: memref<2x16x1xf32, #tpu.memory_space<vmem>>, %arg7: memref<2x16x8xf32, #tpu.memory_space<vmem>>) attributes {dimension_semantics = [#tpu.dimension_semantics<parallel>, #tpu.dimension_semantics<parallel>, #tpu.dimension_semantics<parallel>, #tpu.dimension_semantics<arbitrary>], iteration_bounds = array<i64: 2, 1, 1, 1>, scalar_prefetch = 0 : i64, scratch_operands = 0 : i64, tpu.core_type = #tpu.core_type<tc>, window_params = [{transform_indices = @transform_0, window_bounds = array<i64: 2, 16, 32>}, {transform_indices = @transform_1, window_bounds = array<i64: 2, 32, 8>}, {transform_indices = @transform_2, window_bounds = array<i64: 2, 16, 1>}, {transform_indices = @transform_3, window_bounds = array<i64: 2, 16, 8>}]} {
    %c0 = arith.constant 0 : index
    %c0_0 = arith.constant 0 : index
    %c0_1 = arith.constant 0 : index
    %0 = vector.load %arg4[%c0, %c0_0, %c0_1] : memref<2x16x32xf32, #tpu.memory_space<vmem>>, vector<2x16x32xf32>
    %c0_2 = arith.constant 0 : index
    %c0_3 = arith.constant 0 : index
    %c0_4 = arith.constant 0 : index
    %1 = vector.load %arg5[%c0_2, %c0_3, %c0_4] : memref<2x32x8xf32, #tpu.memory_space<vmem>>, vector<2x32x8xf32>
    "tpu.trace_start"() <{level = 10 : i32, message = "dmk,dkn->dmn"}> : () -> ()
    %cst = arith.constant dense<0.000000e+00> : vector<2x16x8xf32>
    %2 = tpu.matmul %0, %1, %cst {dimension_numbers = #tpu.dot_dimension_numbers<[2], [1], [1], [2], [0, 0, 0, 1, 1, 2], [0], [0]>} : vector<2x16x32xf32>, vector<2x32x8xf32>, vector<2x16x8xf32> -> vector<2x16x8xf32>
    "tpu.trace_stop"() : () -> ()
    %c0_5 = arith.constant 0 : index
    %c0_6 = arith.constant 0 : index
    %c0_7 = arith.constant 0 : index
    %3 = vector.load %arg6[%c0_5, %c0_6, %c0_7] : memref<2x16x1xf32, #tpu.memory_space<vmem>>, vector<2x16x1xf32>
    %4 = vector.broadcast %3 : vector<2x16x1xf32> to vector<2x16x8xf32>
    %5 = arith.addf %2, %4 : vector<2x16x8xf32>
    %c0_8 = arith.constant 0 : index
    %c0_9 = arith.constant 0 : index
    %c0_10 = arith.constant 0 : index
    %6 = vector.load %arg7[%c0_8, %c0_9, %c0_10] : memref<2x16x8xf32, #tpu.memory_space<vmem>>, vector<2x16x8xf32>
    tpu.vector_store %arg7[%c0_8, %c0_9, %c0_10], %5 {strides = array<i32>} : memref<2x16x8xf32, #tpu.memory_space<vmem>>, vector<2x16x8xf32>,
    return
  }
  func.func @transform_0(%arg0: i32, %arg1: i32, %arg2: i32, %arg3: i32) -> (i32, i32, i32) {
    %c0_i32 = arith.constant 0 : i32
    return %arg0, %arg1, %arg3 : i32, i32, i32
  }
  func.func @transform_1(%arg0: i32, %arg1: i32, %arg2: i32, %arg3: i32) -> (i32, i32, i32) {
    %c0_i32 = arith.constant 0 : i32
    return %arg0, %arg3, %arg2 : i32, i32, i32
  }
  func.func @transform_2(%arg0: i32, %arg1: i32, %arg2: i32, %arg3: i32) -> (i32, i32, i32) {
    %c0_i32 = arith.constant 0 : i32
    %c0_i32_0 = arith.constant 0 : i32
    return %arg0, %arg1, %c0_i32 : i32, i32, i32
  }
  func.func @transform_3(%arg0: i32, %arg1: i32, %arg2: i32, %arg3: i32) -> (i32, i32, i32) {
    %c0_i32 = arith.constant 0 : i32
    return %arg0, %arg1, %arg2 : i32, i32, i32
  }
}

</mosaic_0001>

<llo_original>
// kernel: tpu_custom_call.1
$region0: #{tpu_custom_call.1}
  #allocation0 [shape = 'u32[]', space=smem, size = 0x4, offset = 0x4, fixed_abs, tag = 'smem constant byte address 0x4 - core index']
  #allocation1 [shape = 'u32[144,128]{1,0:T(1,128)}', space=vmem, size = 0x12000, scoped, tag = 'internal scratch']
  %s0 = inlined_call_operand.vmem [shape: f32[4,16,32], index: 0, kind: input, shape index: {}]
  %s1 = inlined_call_operand.vmem [shape: f32[4,32,8], index: 1, kind: input, shape index: {}]
  %s2 = inlined_call_operand.vmem [shape: f32[4,16,1], index: 2, kind: input, shape index: {}]
  %s3 = inlined_call_operand.vmem [shape: f32[4,16,8], index: 3, kind: output, shape index: {}]
  %s4 = sld [smem:[#allocation0]]
  $region45: #{tpu_custom_call.1} parent=0
    _
  %s6 = ssub.s32 1, %s4
  %s7 = scalar_select 0, %s6, %s4
  loop: start=0, step=1, limit=4
  $region2: #{tpu_custom_call.1} parent=0 // loop_pre_header
    _
  $region3: #{tpu_custom_call.1} parent=0 // loop_header
    %s9 = sphi 0, %s13
    %p10 = scmp.ge.s32.totalorder %s9, 4
    %s16 = sphi 0, %s42
    %s17 = sphi 0, %s38
    %s18 = sphi 0, %s34
    %s19 = sphi 0, %s30
    %s20 = sphi 0, %s16
    %s21 = sphi 0, %s17
    %s22 = sphi 0, %s18
    %s23 = sphi 0, %s19
    %s24 = sphi 0, %s20
    %s25 = sphi 0, %s21
    %s26 = sphi 0, %s22
    %s27 = sphi 0, %s23
    %s49 = sphi 0, %s51
    %s52 = sphi 0, %s49
    %s53 = sphi 0, %s52
    %s69 = sphi 0, %s53
    %s79 = sphi 0, %s81
    %s82 = sphi 0, %s79
    %s83 = sphi 0, %s82
    %s99 = sphi 0, %s83
    %s107 = sphi 0, %s109
    %s110 = sphi 0, %s107
    %s111 = sphi 0, %s110
    %s127 = sphi 0, %s111
    %s137 = sphi 0, %s139
    %s140 = sphi 0, %s137
    %s141 = sphi 0, %s140
    %s157 = sphi 0, %s141
  $region4: #{tpu_custom_call.1} parent=0 // loop_header_branch
    %12 = sbr.rel (%p10) target = $region8
  $region5: #{tpu_custom_call.1} parent=0 // loop_body
    %s14 = ssub.s32 %s9, 1
    %s15 = ssub.s32 %s9, 2
    %s28 = sadd.s32 1, %s19
    %p29 = scmp.ge.s32.totalorder %s28, 1
    %s30 = scalar_select %p29, 0, %s28
    %s31 = sadd.s32 1, %s18
    %s32 = scalar_select %p29, %s31, %s18
    %p33 = scmp.ge.s32.totalorder %s32, 1
    %s34 = scalar_select %p33, 0, %s32
    %s35 = sadd.s32 1, %s17
    %s36 = scalar_select %p33, %s35, %s17
    %p37 = scmp.ge.s32.totalorder %s36, 1
    %s38 = scalar_select %p37, 0, %s36
    %s39 = sadd.s32 1, %s16
    %s40 = scalar_select %p37, %s39, %s16
    %p41 = scmp.ge.s32.totalorder %s40, 2
    %s42 = scalar_select %p41, 0, %s40
    %s43 = ssub.s32 %s16, %s42
    %s44 = ssub.s32 %s17, %s38
    %s45 = sor.u32 %s43, %s44
    %s46 = ssub.s32 %s19, %s30
    %s47 = sor.u32 %s45, %s46
    %p48 = scmp.eq.s32.totalorder %s47, 0
    %s50 = sadd.s32 %s49, 1
    %s51 = scalar_select %p48, %s49, %s50
    %p54 = pneg %p48
    %p55 = scmp.eq.s32.totalorder %s9, 1
    %p56 = por %p54, %p55
    %p57 = scmp.ne.s32.totalorder %s49, %s52
    %p58 = scmp.eq.s32.totalorder %s9, 0
    %p59 = por %p57, %p58
    %p60 = scmp.ne.s32.totalorder %s49, %s52
    %p61 = scmp.eq.s32.totalorder %s14, 1
    %p62 = por %p60, %p61
    %p63 = scmp.ne.s32.totalorder %s52, %s53
    %p64 = scmp.eq.s32.totalorder %s14, 0
    %p65 = por %p63, %p64
    %p66 = scmp.ne.s32.totalorder %s52, %s53
    %p67 = scmp.eq.s32.totalorder %s15, 1
    %p68 = por %p66, %p67
    %p70 = scmp.ne.s32.totalorder %s53, %s69
    %p71 = scmp.eq.s32.totalorder %s15, 0
    %p72 = por %p70, %p71
    %s73 = ssub.s32 %s16, %s42
    %s74 = ssub.s32 %s19, %s30
    %s75 = sor.u32 %s73, %s74
    %s76 = ssub.s32 %s18, %s34
    %s77 = sor.u32 %s75, %s76
    %p78 = scmp.eq.s32.totalorder %s77, 0
    %s80 = sadd.s32 %s79, 1
    %s81 = scalar_select %p78, %s79, %s80
    %p84 = pneg %p78
    %p85 = scmp.eq.s32.totalorder %s9, 1
    %p86 = por %p84, %p85
    %p87 = scmp.ne.s32.totalorder %s79, %s82
    %p88 = scmp.eq.s32.totalorder %s9, 0
    %p89 = por %p87, %p88
    %p90 = scmp.ne.s32.totalorder %s79, %s82
    %p91 = scmp.eq.s32.totalorder %s14, 1
    %p92 = por %p90, %p91
    %p93 = scmp.ne.s32.totalorder %s82, %s83
    %p94 = scmp.eq.s32.totalorder %s14, 0
    %p95 = por %p93, %p94
    %p96 = scmp.ne.s32.totalorder %s82, %s83
    %p97 = scmp.eq.s32.totalorder %s15, 1
    %p98 = por %p96, %p97
    %p100 = scmp.ne.s32.totalorder %s83, %s99
    %p101 = scmp.eq.s32.totalorder %s15, 0
    %p102 = por %p100, %p101
    %s103 = ssub.s32 %s16, %s42
    %s104 = ssub.s32 %s17, %s38
    %s105 = sor.u32 %s103, %s104
    %p106 = scmp.eq.s32.totalorder %s105, 0
    %s108 = sadd.s32 %s107, 1
    %s109 = scalar_select %p106, %s107, %s108
    %p112 = pneg %p106
    %p113 = scmp.eq.s32.totalorder %s9, 1
    %p114 = por %p112, %p113
    %p115 = scmp.ne.s32.totalorder %s107, %s110
    %p116 = scmp.eq.s32.totalorder %s9, 0
    %p117 = por %p115, %p116
    %p118 = scmp.ne.s32.totalorder %s107, %s110
    %p119 = scmp.eq.s32.totalorder %s14, 1
    %p120 = por %p118, %p119
    %p121 = scmp.ne.s32.totalorder %s110, %s111
    %p122 = scmp.eq.s32.totalorder %s14, 0
    %p123 = por %p121, %p122
    %p124 = scmp.ne.s32.totalorder %s110, %s111
    %p125 = scmp.eq.s32.totalorder %s15, 1
    %p126 = por %p124, %p125
    %p128 = scmp.ne.s32.totalorder %s111, %s127
    %p129 = scmp.eq.s32.totalorder %s15, 0
    %p130 = por %p128, %p129
    %s131 = ssub.s32 %s16, %s42
    %s132 = ssub.s32 %s17, %s38
    %s133 = sor.u32 %s131, %s132
    %s134 = ssub.s32 %s18, %s34
    %s135 = sor.u32 %s133, %s134
    %p136 = scmp.eq.s32.totalorder %s135, 0
    %s138 = sadd.s32 %s137, 1
    %s139 = scalar_select %p136, %s137, %s138
    %p142 = pneg %p136
    %p143 = scmp.eq.s32.totalorder %s9, 1
    %p144 = por %p142, %p143
    %p145 = scmp.ne.s32.totalorder %s137, %s140
    %p146 = scmp.eq.s32.totalorder %s9, 0
    %p147 = por %p145, %p146
    %p148 = scmp.ne.s32.totalorder %s137, %s140
    %p149 = scmp.eq.s32.totalorder %s14, 1
    %p150 = por %p148, %p149
    %p151 = scmp.ne.s32.totalorder %s140, %s141
    %p152 = scmp.eq.s32.totalorder %s14, 0
    %p153 = por %p151, %p152
    %p154 = scmp.ne.s32.totalorder %s140, %s141
    %p155 = scmp.eq.s32.totalorder %s15, 1
    %p156 = por %p154, %p155
    %p158 = scmp.ne.s32.totalorder %s141, %s157
    %p159 = scmp.eq.s32.totalorder %s15, 0
    %p160 = por %p158, %p159
    %p161 = scmp.le.s32.totalorder 1, %s9
    %p162 = scmp.lt.s32.totalorder %s9, 3
    %p163 = pnand %p161, %p162
    %p164 = pneg %p163
    // Predicated region
    $region9: #{tpu_custom_call.1} parent=5 // pred_check
      _
    $region10: #{tpu_custom_call.1} parent=5 // pred_check_branch
      %166 = sbr.rel (%p163) target = $region12
    $region11: #{tpu_custom_call.1} parent=5 // pred_region
      %s167 = ssub.s32 %s9, 1
    $region12: #{tpu_custom_call.1} parent=5 // pred_fallthru
      _
    %p168 = scmp.lt.s32.totalorder %s9, 2
    // Predicated region
    $region13: #{tpu_custom_call.1} parent=5 // pred_check
      %p169 = pneg %p168
    $region14: #{tpu_custom_call.1} parent=5 // pred_check_branch
      %171 = sbr.rel (%p169) target = $region16
    $region15: #{tpu_custom_call.1} parent=5 // pred_region
      // Predicated region
      $region17: #{tpu_custom_call.1} parent=15 // pred_check
        %p172 = pneg %p59
      $region18: #{tpu_custom_call.1} parent=15 // pred_check_branch
        %174 = sbr.rel (%p172) target = $region20
      $region19: #{tpu_custom_call.1} parent=15 // pred_region
        %s175 = smul.u32 2, %s16
        %s176 = smul.u32 2, %s17
        %p177 = scmp.lt.s32.totalorder %s175, 3
        %s178 = scalar_select %p177, %s175, 3
        %p179 = scmp.lt.s32.totalorder %s176, 1
        %s180 = scalar_select %p179, %s176, 1
        %p181 = scmp.lt.s32.totalorder %s19, 0
        %s182 = scalar_select %p181, %s19, 0
        %s183 = sadd.s32 %s182, %s180
        %s184 = smul.addr %s178, 2
        %s185 = sadd.s32 %s183, %s184
        %s186 = smul.addr %s185, 8
        %s187 = scalar_lea.vmem %s0, %s186
        %s188 = smul.u32 2, %s16
        %s189 = smul.u32 2, %s17
      $region20: #{tpu_custom_call.1} parent=15 // pred_fallthru
        _
      // Predicated region
      $region21: #{tpu_custom_call.1} parent=15 // pred_check
        %p190 = pneg %p89
      $region22: #{tpu_custom_call.1} parent=15 // pred_check_branch
        %192 = sbr.rel (%p190) target = $region24
      $region23: #{tpu_custom_call.1} parent=15 // pred_region
        %s193 = smul.u32 2, %s16
        %s194 = smul.u32 4, %s19
        %p195 = scmp.lt.s32.totalorder %s193, 3
        %s196 = scalar_select %p195, %s193, 3
        %p197 = scmp.lt.s32.totalorder %s194, 3
        %s198 = scalar_select %p197, %s194, 3
        %p199 = scmp.lt.s32.totalorder %s18, 0
        %s200 = scalar_select %p199, %s18, 0
        %s201 = sadd.s32 %s200, %s198
        %s202 = smul.addr %s196, 4
        %s203 = sadd.s32 %s201, %s202
        %s204 = smul.addr %s203, 8
        %s205 = scalar_lea.vmem %s1, %s204
        %s206 = smul.u32 2, %s16
        %s207 = smul.u32 4, %s19
      $region24: #{tpu_custom_call.1} parent=15 // pred_fallthru
        _
      // Predicated region
      $region25: #{tpu_custom_call.1} parent=15 // pred_check
        %p208 = pneg %p117
      $region26: #{tpu_custom_call.1} parent=15 // pred_check_branch
        %210 = sbr.rel (%p208) target = $region28
      $region27: #{tpu_custom_call.1} parent=15 // pred_region
        %s211 = smul.u32 2, %s16
        %s212 = smul.u32 2, %s17
        %p213 = scmp.lt.s32.totalorder %s211, 3
        %s214 = scalar_select %p213, %s211, 3
        %p215 = scmp.lt.s32.totalorder %s212, 1
        %s216 = scalar_select %p215, %s212, 1
        %s217 = smul.addr %s214, 2
        %s218 = sadd.s32 %s216, %s217
        %s219 = smul.addr %s218, 8
        %s220 = scalar_lea.vmem %s2, %s219
        %s221 = smul.u32 2, %s16
        %s222 = smul.u32 2, %s17
      $region28: #{tpu_custom_call.1} parent=15 // pred_fallthru
        _
    $region16: #{tpu_custom_call.1} parent=5 // pred_fallthru
      _
    %p223 = scmp.le.s32.totalorder 1, %s9
    %p224 = scmp.lt.s32.totalorder %s9, 3
    %p225 = pnand %p223, %p224
    %p226 = pneg %p225
    // Predicated region
    $region29: #{tpu_custom_call.1} parent=5 // pred_check
      _
    $region30: #{tpu_custom_call.1} parent=5 // pred_check_branch
      %228 = sbr.rel (%p225) target = $region32
    $region31: #{tpu_custom_call.1} parent=5 // pred_region
      %s229 = ssub.s32 %s9, 1
      %s230 = smul.u32 2, %s20
      %s231 = smul.u32 2, %s21
      %p232 = scmp.lt.s32.totalorder %s230, 3
      %s233 = scalar_select %p232, %s230, 3
      %p234 = scmp.lt.s32.totalorder %s231, 1
      %s235 = scalar_select %p234, %s231, 1
      %p236 = scmp.lt.s32.totalorder %s23, 0
      %s237 = scalar_select %p236, %s23, 0
      %s238 = sadd.s32 %s237, %s235
      %s239 = smul.addr %s233, 2
      %s240 = sadd.s32 %s238, %s239
      %s241 = smul.addr %s240, 8
      %s242 = scalar_lea.vmem %s0, %s241
      %p243 = pneg %p65
      %p244 = pneg %p62
      %s245 = smul.u32 2, %s20
      %s246 = smul.u32 4, %s23
      %p247 = scmp.lt.s32.totalorder %s245, 3
      %s248 = scalar_select %p247, %s245, 3
      %p249 = scmp.lt.s32.totalorder %s246, 3
      %s250 = scalar_select %p249, %s246, 3
      %p251 = scmp.lt.s32.totalorder %s22, 0
      %s252 = scalar_select %p251, %s22, 0
      %s253 = sadd.s32 %s252, %s250
      %s254 = smul.addr %s248, 4
      %s255 = sadd.s32 %s253, %s254
      %s256 = smul.addr %s255, 8
      %s257 = scalar_lea.vmem %s1, %s256
      %p258 = pneg %p95
      %p259 = pneg %p92
      %s260 = smul.u32 2, %s20
      %s261 = smul.u32 2, %s21
      %p262 = scmp.lt.s32.totalorder %s260, 3
      %s263 = scalar_select %p262, %s260, 3
      %p264 = scmp.lt.s32.totalorder %s261, 1
      %s265 = scalar_select %p264, %s261, 1
      %s266 = smul.addr %s263, 2
      %s267 = sadd.s32 %s265, %s266
      %s268 = smul.addr %s267, 8
      %s269 = scalar_lea.vmem %s2, %s268
      %p270 = pneg %p123
      %p271 = pneg %p120
      %p272 = pneg %p153
      %p273 = pneg %p150
      %s274 = smul.u32 2, %s20
      %s275 = smul.u32 2, %s21
      %p276 = scmp.lt.s32.totalorder %s274, 3
      %s277 = scalar_select %p276, %s274, 3
      %p278 = scmp.lt.s32.totalorder %s275, 1
      %s279 = scalar_select %p278, %s275, 1
      %p280 = scmp.lt.s32.totalorder %s22, 0
      %s281 = scalar_select %p280, %s22, 0
      %s282 = sadd.s32 %s281, %s279
      %s283 = smul.addr %s277, 2
      %s284 = sadd.s32 %s282, %s283
      %s285 = smul.addr %s284, 8
      %s286 = scalar_lea.vmem %s3, %s285
      %s287 = smul.u32 2, %s20
      %s288 = smul.u32 2, %s21
      %p289 = scmp.lt.s32.totalorder %s287, 3
      %s290 = scalar_select %p289, %s287, 3
      %p291 = scmp.lt.s32.totalorder %s288, 1
      %s292 = scalar_select %p291, %s288, 1
      %p293 = scmp.lt.s32.totalorder %s23, 0
      %s294 = scalar_select %p293, %s23, 0
      %s295 = sadd.s32 %s294, %s292
      %s296 = smul.addr %s290, 2
      %s297 = sadd.s32 %s295, %s296
      %s298 = smul.addr %s297, 8
      %s299 = scalar_lea.vmem %s0, %s298
      %s300 = smul.u32 2, %s20
      %s301 = smul.u32 2, %s21
      %s302 = smul.u32 2, %s20
      %s303 = smul.u32 4, %s23
      %p304 = scmp.lt.s32.totalorder %s302, 3
      %s305 = scalar_select %p304, %s302, 3
      %p306 = scmp.lt.s32.totalorder %s303, 3
      %s307 = scalar_select %p306, %s303, 3
      %p308 = scmp.lt.s32.totalorder %s22, 0
      %s309 = scalar_select %p308, %s22, 0
      %s310 = sadd.s32 %s309, %s307
      %s311 = smul.addr %s305, 4
      %s312 = sadd.s32 %s310, %s311
      %s313 = smul.addr %s312, 8
      %s314 = scalar_lea.vmem %s1, %s313
      %s315 = smul.u32 2, %s20
      %s316 = smul.u32 4, %s23
      %s317 = smul.u32 2, %s20
      %s318 = smul.u32 2, %s21
      %p319 = scmp.lt.s32.totalorder %s317, 3
      %s320 = scalar_select %p319, %s317, 3
      %p321 = scmp.lt.s32.totalorder %s318, 1
      %s322 = scalar_select %p321, %s318, 1
      %s323 = smul.addr %s320, 2
      %s324 = sadd.s32 %s322, %s323
      %s325 = smul.addr %s324, 8
      %s326 = scalar_lea.vmem %s2, %s325
      %s327 = smul.u32 2, %s20
      %s328 = smul.u32 2, %s21
      %s329 = smul.u32 2, %s20
      %s330 = smul.u32 2, %s21
      %p331 = scmp.lt.s32.totalorder %s329, 3
      %s332 = scalar_select %p331, %s329, 3
      %p333 = scmp.lt.s32.totalorder %s330, 1
      %s334 = scalar_select %p333, %s330, 1
      %p335 = scmp.lt.s32.totalorder %s22, 0
      %s336 = scalar_select %p335, %s22, 0
      %s337 = sadd.s32 %s336, %s334
      %s338 = smul.addr %s332, 2
      %s339 = sadd.s32 %s337, %s338
      %s340 = smul.addr %s339, 8
      %s341 = scalar_lea.vmem %s3, %s340
      %s342 = smul.u32 2, %s20
      %s343 = smul.u32 2, %s21
      %v344 = vld [vmem:[%s299] sm:$0xff]
      %v345 = vld [vmem:[%s299 + $0x8] sm:$0xff]
      %v346 = vld [vmem:[%s299 + $0x10] sm:$0xff]
      %v347 = vld [vmem:[%s299 + $0x18] sm:$0xff]
      %v348 = vld [vmem:[%s314] sm:$0xff]
      %v349 = vld [vmem:[%s314 + $0x8] sm:$0xff]
      %v350 = vld [vmem:[%s314 + $0x10] sm:$0xff]
      %v351 = vld [vmem:[%s314 + $0x18] sm:$0xff]
      %v352 = vld [vmem:[%s314 + $0x20] sm:$0xff]
      %v353 = vld [vmem:[%s314 + $0x28] sm:$0xff]
      %v354 = vld [vmem:[%s314 + $0x30] sm:$0xff]
      %v355 = vld [vmem:[%s314 + $0x38] sm:$0xff]
      %v356 = vld [vmem:[%s326] sm:$0xff]
      %v357 = vld [vmem:[%s326 + $0x8] sm:$0xff]
      %v358 = vld [vmem:[%s326 + $0x10] sm:$0xff]
      %v359 = vld [vmem:[%s326 + $0x18] sm:$0xff]
      %361 = vset.pattern.permute.xlu0 0
      %362 = vperm.xlu0 %361, %v356
      %v363 = vpop.permute.xlu0 %362
      %366 = vset.pattern.permute.xlu0 0
      %367 = vperm.xlu0 %366, %v357
      %v368 = vpop.permute.xlu0 %367
      %371 = vset.pattern.permute.xlu0 0
      %372 = vperm.xlu0 %371, %v358
      %v373 = vpop.permute.xlu0 %372
      %376 = vset.pattern.permute.xlu0 0
      %377 = vperm.xlu0 %376, %v359
      %v378 = vpop.permute.xlu0 %377
      %vm380 = vcmask 261120
      %v382 = vsel %vm380, %v344, 0
      %v385 = vsel %vm380, %v345, 0
      %387 = vmatprep.subr.mxu0 0.0
      %388 = vmatpush1.msra.mxu0 %v348
      %389 = vmatprep.subr.mxu0 0.0
      %390 = vmatpush1.msra.mxu0 %v349
      %391 = vmatprep.subr.mxu0 0.0
      %392 = vmatpush1.msra.mxu0 %v350
      %393 = vmatprep.subr.mxu0 0.0
      %394 = vmatpush1.msra.mxu0 %v351
      %395 = vmatprep.subr.mxu0 0.0
      %396 = vmatpush1.msra.mxu0 0.0
      %397 = vmatprep.subr.mxu0 0.0
      %398 = vmatpush1.msra.mxu0 0.0
      %399 = vmatprep.subr.mxu0 0.0
      %400 = vmatpush1.msra.mxu0 0.0
      %401 = vmatprep.subr.mxu0 0.0
      %402 = vmatpush1.msra.mxu0 0.0
      %403 = vmatprep.subr.mxu0 0.0
      %404 = vmatpush1.msra.mxu0 0.0
      %405 = vmatprep.subr.mxu0 0.0
      %406 = vmatpush1.msra.mxu0 0.0
      %407 = vmatprep.subr.mxu0 0.0
      %408 = vmatpush1.msra.mxu0 0.0
      %409 = vmatprep.subr.mxu0 0.0
      %410 = vmatpush1.msra.mxu0 0.0
      %411 = vmatprep.subr.mxu0 0.0
      %412 = vmatpush1.msra.mxu0 0.0
      %413 = vmatprep.subr.mxu0 0.0
      %414 = vmatpush1.msra.mxu0 0.0
      %415 = vmatprep.subr.mxu0 0.0
      %416 = vmatpush1.msra.mxu0 0.0
      %417 = vmatprep.subr.mxu0 0.0
      %418 = vmatpush1.msra.mxu0 0.0
      %419 = vmatprep.subr.mxu0 0.0
      %420 = vmatpush1.msra.mxu0 0.0
      %421 = vmatprep.subr.mxu0 0.0
      %422 = vmatpush1.msra.mxu0 0.0
      %423 = vmatprep.subr.mxu0 0.0
      %424 = vmatpush1.msra.mxu0 0.0
      %425 = vmatprep.subr.mxu0 0.0
      %426 = vmatpush1.msra.mxu0 0.0
      %427 = vmatprep.subr.mxu0 0.0
      %428 = vmatpush1.msra.mxu0 0.0
      %429 = vmatprep.subr.mxu0 0.0
      %430 = vmatpush1.msra.mxu0 0.0
      %431 = vmatprep.subr.mxu0 0.0
      %432 = vmatpush1.msra.mxu0 0.0
      %433 = vmatprep.subr.mxu0 0.0
      %434 = vmatpush1.msra.mxu0 0.0
      %435 = vmatprep.subr.mxu0 0.0
      %436 = vmatpush1.msra.mxu0 0.0
      %437 = vmatprep.subr.mxu0 0.0
      %438 = vmatpush1.msra.mxu0 0.0
      %439 = vmatprep.subr.mxu0 0.0
      %440 = vmatpush1.msra.mxu0 0.0
      %441 = vmatprep.subr.mxu0 0.0
      %442 = vmatpush1.msra.mxu0 0.0
      %443 = vmatprep.subr.mxu0 0.0
      %444 = vmatpush1.msra.mxu0 0.0
      %445 = vmatprep.subr.mxu0 0.0
      %446 = vmatpush1.msra.mxu0 0.0
      %447 = vmatprep.subr.mxu0 0.0
      %448 = vmatpush1.msra.mxu0 0.0
      %449 = vmatprep.subr.mxu0 0.0
      %450 = vmatpush1.msra.mxu0 0.0
      %451 = vmatprep.mubr.f32.mxu0 0.0
      %452 = vmatmul.mubr.f32.gmra.mrb[0].mxu0 %v382
      %v453 = vpop.f32.mrb[0].mxu0
      %v454 = vadd.f32 %v363, %v453
      %v455 = vpop.f32.mrb[0].mxu0
      %456 = vmatprep.mubr.f32.mxu0 0.0
      %457 = vmatmul.mubr.f32.gmra.mrb[0].mxu0 %v385
      %v458 = vpop.f32.mrb[0].mxu0
      %v459 = vadd.f32 %v368, %v458
      %v460 = vpop.f32.mrb[0].mxu0
      %461 = vdwg.mxu0
      %v463 = vsel %vm380, %v346, 0
      %v466 = vsel %vm380, %v347, 0
      %468 = vmatprep.subr.mxu0 0.0
      %469 = vmatpush1.msra.mxu0 %v352
      %470 = vmatprep.subr.mxu0 0.0
      %471 = vmatpush1.msra.mxu0 %v353
      %472 = vmatprep.subr.mxu0 0.0
      %473 = vmatpush1.msra.mxu0 %v354
      %474 = vmatprep.subr.mxu0 0.0
      %475 = vmatpush1.msra.mxu0 %v355
      %476 = vmatprep.subr.mxu0 0.0
      %477 = vmatpush1.msra.mxu0 0.0
      %478 = vmatprep.subr.mxu0 0.0
      %479 = vmatpush1.msra.mxu0 0.0
      %480 = vmatprep.subr.mxu0 0.0
      %481 = vmatpush1.msra.mxu0 0.0
      %482 = vmatprep.subr.mxu0 0.0
      %483 = vmatpush1.msra.mxu0 0.0
      %484 = vmatprep.subr.mxu0 0.0
      %485 = vmatpush1.msra.mxu0 0.0
      %486 = vmatprep.subr.mxu0 0.0
      %487 = vmatpush1.msra.mxu0 0.0
      %488 = vmatprep.subr.mxu0 0.0
      %489 = vmatpush1.msra.mxu0 0.0
      %490 = vmatprep.subr.mxu0 0.0
      %491 = vmatpush1.msra.mxu0 0.0
      %492 = vmatprep.subr.mxu0 0.0
      %493 = vmatpush1.msra.mxu0 0.0
      %494 = vmatprep.subr.mxu0 0.0
      %495 = vmatpush1.msra.mxu0 0.0
      %496 = vmatprep.subr.mxu0 0.0
      %497 = vmatpush1.msra.mxu0 0.0
      %498 = vmatprep.subr.mxu0 0.0
      %499 = vmatpush1.msra.mxu0 0.0
      %500 = vmatprep.subr.mxu0 0.0
      %501 = vmatpush1.msra.mxu0 0.0
      %502 = vmatprep.subr.mxu0 0.0
      %503 = vmatpush1.msra.mxu0 0.0
      %504 = vmatprep.subr.mxu0 0.0
      %505 = vmatpush1.msra.mxu0 0.0
      %506 = vmatprep.subr.mxu0 0.0
      %507 = vmatpush1.msra.mxu0 0.0
      %508 = vmatprep.subr.mxu0 0.0
      %509 = vmatpush1.msra.mxu0 0.0
      %510 = vmatprep.subr.mxu0 0.0
      %511 = vmatpush1.msra.mxu0 0.0
      %512 = vmatprep.subr.mxu0 0.0
      %513 = vmatpush1.msra.mxu0 0.0
      %514 = vmatprep.subr.mxu0 0.0
      %515 = vmatpush1.msra.mxu0 0.0
      %516 = vmatprep.subr.mxu0 0.0
      %517 = vmatpush1.msra.mxu0 0.0
      %518 = vmatprep.subr.mxu0 0.0
      %519 = vmatpush1.msra.mxu0 0.0
      %520 = vmatprep.subr.mxu0 0.0
      %521 = vmatpush1.msra.mxu0 0.0
      %522 = vmatprep.subr.mxu0 0.0
      %523 = vmatpush1.msra.mxu0 0.0
      %524 = vmatprep.subr.mxu0 0.0
      %525 = vmatpush1.msra.mxu0 0.0
      %526 = vmatprep.subr.mxu0 0.0
      %527 = vmatpush1.msra.mxu0 0.0
      %528 = vmatprep.subr.mxu0 0.0
      %529 = vmatpush1.msra.mxu0 0.0
      %530 = vmatprep.subr.mxu0 0.0
      %531 = vmatpush1.msra.mxu0 0.0
      %532 = vmatprep.mubr.f32.mxu0 0.0
      %533 = vmatmul.mubr.f32.gmra.mrb[0].mxu0 %v463
      %v534 = vpop.f32.mrb[0].mxu0
      %v535 = vadd.f32 %v373, %v534
      %v536 = vpop.f32.mrb[0].mxu0
      %537 = vmatprep.mubr.f32.mxu0 0.0
      %538 = vmatmul.mubr.f32.gmra.mrb[0].mxu0 %v466
      %v539 = vpop.f32.mrb[0].mxu0
      %v540 = vadd.f32 %v378, %v539
      %v541 = vpop.f32.mrb[0].mxu0
      %542 = vdwg.mxu0
      %vm543 = vcmask 64512
      %544 = vst.msk [vmem:[%s341] sm:$0xff] %vm543, %v454
      %545 = vst.msk [vmem:[%s341 + $0x8] sm:$0xff] %vm543, %v459
      %546 = vst.msk [vmem:[%s341 + $0x10] sm:$0xff] %vm543, %v535
      %547 = vst.msk [vmem:[%s341 + $0x18] sm:$0xff] %vm543, %v540
      %s548 = smul.u32 2, %s20
      %s549 = smul.u32 2, %s21
      %p550 = scmp.lt.s32.totalorder %s548, 3
      %s551 = scalar_select %p550, %s548, 3
      %p552 = scmp.lt.s32.totalorder %s549, 1
      %s553 = scalar_select %p552, %s549, 1
      %p554 = scmp.lt.s32.totalorder %s22, 0
      %s555 = scalar_select %p554, %s22, 0
      %s556 = sadd.s32 %s555, %s553
      %s557 = smul.addr %s551, 2
      %s558 = sadd.s32 %s556, %s557
      %s559 = smul.addr %s558, 8
      %s560 = scalar_lea.vmem %s3, %s559
      // Predicated region
      $region33: #{tpu_custom_call.1} parent=31 // pred_check
        %p561 = pneg %p150
      $region34: #{tpu_custom_call.1} parent=31 // pred_check_branch
        %563 = sbr.rel (%p561) target = $region36
      $region35: #{tpu_custom_call.1} parent=31 // pred_region
        %s564 = smul.u32 2, %s20
        %s565 = smul.u32 2, %s21
      $region36: #{tpu_custom_call.1} parent=31 // pred_fallthru
        _
    $region32: #{tpu_custom_call.1} parent=5 // pred_fallthru
      _
    %p566 = scmp.le.s32.totalorder 2, %s9
    // Predicated region
    $region37: #{tpu_custom_call.1} parent=5 // pred_check
      %p567 = pneg %p566
    $region38: #{tpu_custom_call.1} parent=5 // pred_check_branch
      %569 = sbr.rel (%p567) target = $region40
    $region39: #{tpu_custom_call.1} parent=5 // pred_region
      %s570 = ssub.s32 %s9, 2
      // Predicated region
      $region41: #{tpu_custom_call.1} parent=39 // pred_check
        %p571 = pneg %p156
      $region42: #{tpu_custom_call.1} parent=39 // pred_check_branch
        %573 = sbr.rel (%p571) target = $region44
      $region43: #{tpu_custom_call.1} parent=39 // pred_region
        %s574 = smul.u32 2, %s24
        %s575 = smul.u32 2, %s25
        %p576 = scmp.lt.s32.totalorder %s574, 3
        %s577 = scalar_select %p576, %s574, 3
        %p578 = scmp.lt.s32.totalorder %s575, 1
        %s579 = scalar_select %p578, %s575, 1
        %p580 = scmp.lt.s32.totalorder %s26, 0
        %s581 = scalar_select %p580, %s26, 0
        %s582 = sadd.s32 %s581, %s579
        %s583 = smul.addr %s577, 2
        %s584 = sadd.s32 %s582, %s583
        %s585 = smul.addr %s584, 8
        %s586 = scalar_lea.vmem %s3, %s585
      $region44: #{tpu_custom_call.1} parent=39 // pred_fallthru
        _
    $region40: #{tpu_custom_call.1} parent=5 // pred_fallthru
      _
  $region6: #{tpu_custom_call.1} parent=0 // loop_footer
    %s13 = sadd.s32 1, %s9
  $region7: #{tpu_custom_call.1} parent=0 // loop_footer_branch
    %8 = sbr.rel target = $region3
  $region8: #{tpu_custom_call.1} parent=0 // loop_exit
    _

</llo_original>
